<compile_context>
chip_gen: v5e
topology: v5e:2x2
jax: 0.10.0
libtpu: 0.0.40
codegen_flags: <defaults>
</compile_context>

<pallas_src>
import jax
import jax.numpy as jnp
from jax.experimental import pallas as pl
from jax.experimental.pallas import tpu as pltpu

LN_EPS = 1e-5  # nn.LayerNorm default


def _pre_ln_linear_kernel(x_ref, g_ref, b_ref, w_ref, bias_ref, o_ref, xn_ref):
    """grid = (row_tiles, col_tiles).

    The column axis MUST stay innermost and sequential ("arbitrary"):
    LayerNorm for the current row tile is computed once (column step 0) into
    the xn VMEM scratch and reused across all column tiles of that row tile.
    """

    @pl.when(pl.program_id(1) == 0)
    def _():
        x = x_ref[...].astype(jnp.float32)                       # (Tm, D)
        inv_d = jnp.float32(1.0 / x.shape[-1])
        mean = jnp.sum(x, axis=-1, keepdims=True) * inv_d
        xc = x - mean
        # two-pass biased variance (matches torch.nn.LayerNorm numerics)
        var = jnp.sum(xc * xc, axis=-1, keepdims=True) * inv_d
        xn = xc * jax.lax.rsqrt(var + jnp.float32(LN_EPS))
        xn = xn * g_ref[...].astype(jnp.float32) + b_ref[...].astype(jnp.float32)
        xn_ref[...] = xn.astype(xn_ref.dtype)

    # fn = Linear: MXU matmul in the weight dtype (bf16 fast path), f32 accum.
    y = jnp.dot(xn_ref[...], w_ref[...], preferred_element_type=jnp.float32)
    y = y + bias_ref[...].astype(jnp.float32)
    o_ref[...] = y.astype(o_ref.dtype)


def _round_up(v, m):
    return ((v + m - 1) // m) * m


def _sublane_align(itemsize):
    # sub-32-bit dtypes pack multiple rows per sublane
    return {4: 8, 2: 16, 1: 32}.get(itemsize, 8)


def _vmem_capacity_bytes():
    # Assumed to report per-TensorCore VMEM capacity.
    try:
        cap = int(pltpu.get_tpu_info().vmem_capacity_bytes)
        if cap > 0:
            return cap
    except Exception:
        pass
    return 64 * 2**20  # conservative (v7x per-TC size) if the query fails


def pre_layernorm_linear(x, gamma, beta, w, bias, *, row_tile=None,
                         col_tile=None, vmem_limit_bytes=None):
    """x: (T, D). Returns LayerNorm(x) @ W + bias with shape (T, D_out)."""
    T, D = x.shape
    D_out = w.shape[1]
    x_b, w_b, o_b = x.dtype.itemsize, w.dtype.itemsize, x.dtype.itemsize

    vmem_cap = _vmem_capacity_bytes()
    # ~20% headroom for Mosaic internal scratch / semaphores:
    #   128 MiB parts (v5e/v6e) -> ~102 MiB, 64 MiB/TC (v7x) -> ~51 MiB.
    vmem_ceiling = min(vmem_cap * 4 // 5, vmem_cap - 8 * 2**20)
    big_vmem = vmem_cap >= 96 * 2**20

    align = _sublane_align(w_b)
    row_cap = _round_up(T, align)

    def working_set(rt, ct, w_bufs):
        return (2 * rt * D * x_b                  # x tiles (double-buffered)
                + w_bufs * D * ct * w_b           # W
                + 2 * rt * ct * o_b               # out tiles
                + rt * D * w_b                    # xn scratch (matmul dtype)
                + 2 * D * 4                       # gamma + beta
                + w_bufs * ct * 4)                # bias

    # ---- row tile ----------------------------------------------------------
    user_row = row_tile is not None
    if not user_row:
        if T <= 128:
            row_tile = row_cap
        elif T <= 512:
            row_tile = 128             # >= 2 row tiles: feeds both v7x TCs
        elif big_vmem and T >= 2048:
            row_tile = 512             # v5e/v6e: amortize per-grid-step cost
        else:
            row_tile = 256
    row_tile = max(8, min(row_tile, row_cap))

    # ---- column tile / W residency -----------------------------------------
    if col_tile is None:
        chosen = None
        # Prefer a fully resident, single-buffered W.
        for rt in ((row_tile,) if user_row else (row_tile, 128, 64)):
            rt = min(rt, row_tile)
            if working_set(rt, D_out, w_bufs=1) <= vmem_ceiling:
                chosen = (rt, D_out)
                break
        if chosen is None:
            # N-tiling: W is re-streamed once per row tile, so pick the largest
            # row tile that fits, then the widest lane-dense column tile.
            for rt in (512, 384, 256, 192, 128, 64, 32, 16, 8):
                rt_c = row_tile if user_row else min(rt, row_cap)
                for ct in (1024, 512, 384, 256, 128):
                    ct_c = min(ct, D_out)
                    if ct_c != D_out and ct_c % 128:
                        continue
                    if working_set(rt_c, ct_c, w_bufs=2) <= vmem_ceiling:
                        chosen = (rt_c, ct_c)
                        break
                if chosen:
                    break
        if chosen is None:
            # TODO(synk): for very large D add a K grid axis with an f32 VMEM
            # accumulator (P3) instead of shrinking tiles further.
            chosen = (min(64, row_cap), D_out if D_out <= 128 else 128)
        row_tile, col_tile = chosen
    else:
        col_tile = min(col_tile, D_out)
        if col_tile != D_out and col_tile % 128:
            col_tile = D_out           # keep output tiles lane-dense / legal

    resident = col_tile == D_out
    grid = (pl.cdiv(T, row_tile), pl.cdiv(D_out, col_tile))

    def build(single_buffer):
        w_bufs = 1 if (resident and single_buffer) else 2
        gb_bufs = 1 if single_buffer else 2
        est = (2 * row_tile * D * x_b
               + w_bufs * D * col_tile * w_b
               + 2 * row_tile * col_tile * o_b
               + row_tile * D * w_b
               + gb_bufs * 2 * D * gamma.dtype.itemsize
               + w_bufs * col_tile * bias.dtype.itemsize)
        vmem_limit = vmem_limit_bytes or int(
            min(max(est * 5 // 4, 16 * 2**20), vmem_ceiling))

        def spec(shape, idx, single):
            if single and single_buffer:
                # Block index never changes -> single buffer (halves VMEM cost
                # of a large resident W; important on v7x's 64 MiB).
                return pl.BlockSpec(shape, idx, pipeline_mode=pl.Buffered(1))
            return pl.BlockSpec(shape, idx)

        return pl.pallas_call(
            _pre_ln_linear_kernel,
            out_shape=jax.ShapeDtypeStruct((T, D_out), x.dtype),
            grid=grid,
            in_specs=[
                # TODO(synk): x is only read at column step 0; for VMEM-tight
                # v7x configs it could be single-buffered via a manual DMA.
                pl.BlockSpec((row_tile, D), lambda i, j: (i, 0)),      # x rows
                spec((1, D), lambda i, j: (0, 0), True),               # gamma
                spec((1, D), lambda i, j: (0, 0), True),               # beta
                spec((D, col_tile), lambda i, j: (0, j), resident),    # W
                spec((1, col_tile), lambda i, j: (0, j), resident),    # bias
            ],
            out_specs=pl.BlockSpec((row_tile, col_tile), lambda i, j: (i, j)),
            scratch_shapes=[pltpu.VMEM((row_tile, D), w.dtype)],       # LN(x)
            compiler_params=pltpu.CompilerParams(
                # Column axis must stay innermost + sequential ("arbitrary"):
                # the kernel caches LN(x) per row tile in the VMEM scratch.
                dimension_semantics=("parallel", "arbitrary"),
                vmem_limit_bytes=vmem_limit),
        )(x, gamma, beta, w, bias)

    try:
        return build(single_buffer=True)
    except Exception:
        # pl.Buffered(1) not supported on this jax/pallas version: fall back
        # to default double-buffering (same kernel, same semantics).
        return build(single_buffer=False)


class PreLayerNormPallas:
    """Mirror of PyTorch PreLayerNorm(dim, fn) with fn = Linear(dim, dim)."""

    def __init__(self, dim, key, param_dtype=jnp.bfloat16):
        # nn.LayerNorm default init: weight=1, bias=0 (kept f32 for LN math)
        self.gamma = jnp.ones((1, dim), jnp.float32)
        self.beta = jnp.zeros((1, dim), jnp.float32)
        kw, kb = jax.random.split(key)
        w = jax.random.normal(kw, (dim, dim), jnp.float32) / jnp.sqrt(
            jnp.float32(dim))
        b = jax.random.normal(kb, (1, dim), jnp.float32) * 0.01
        # bf16 weights by default: fast MXU path, half the W VMEM/HBM traffic.
        self.w = w.astype(param_dtype)
        self.b = b.astype(jnp.float32)

    def __call__(self, x, **kwargs):
        B, S, D = x.shape
        y = pre_layernorm_linear(x.reshape(B * S, D), self.gamma, self.beta,
                                 self.w, self.b, **kwargs)
        return y.reshape(B, S, -1)


def _reference(x, gamma, beta, w, b):
    xf = x.astype(jnp.float32)
    mean = jnp.mean(xf, axis=-1, keepdims=True)
    var = jnp.mean((xf - mean) ** 2, axis=-1, keepdims=True)
    xn = (xf - mean) / jnp.sqrt(var + LN_EPS)
    xn = xn * gamma.reshape(-1) + beta.reshape(-1)
    return xn @ w.astype(jnp.float32) + b.reshape(-1)


if __name__ == "__main__":
    key = jax.random.PRNGKey(0)
    kx, kp, kx2, kp2 = jax.random.split(key, 4)

    # --- small f32 check: resident-W / Buffered(1) path, grid (1, 1) --------
    batch, seq, hidden = 2, 8, 32
    x = jax.random.normal(kx, (batch, seq, hidden), jnp.float32)
    mod = PreLayerNormPallas(hidden, kp, param_dtype=jnp.float32)
    out = jax.block_until_ready(mod(x))
    ref = _reference(x.reshape(-1, hidden), mod.gamma, mod.beta, mod.w, mod.b)
    assert out.shape == (batch, seq, hidden)
    assert jnp.allclose(out.reshape(-1, hidden), ref, atol=1e-3, rtol=1e-3), \
        "f32 path mismatch vs reference"

    # --- bf16-weight default, forced multi-step (2x2) N-tiled grid ----------
    batch2, seq2, hidden2 = 2, 64, 256
    x2 = jax.random.normal(kx2, (batch2, seq2, hidden2), jnp.float32)
    mod2 = PreLayerNormPallas(hidden2, kp2)          # bf16 default
    out2 = jax.block_until_ready(mod2(x2, row_tile=64, col_tile=128))
    ref2 = _reference(x2.reshape(-1, hidden2), mod2.gamma, mod2.beta,
                      mod2.w, mod2.b)
    assert out2.shape == (batch2, seq2, hidden2)
    max_err = jnp.max(jnp.abs(out2.reshape(-1, hidden2) - ref2))
    assert max_err < 0.25, f"bf16 N-tiled path mismatch vs reference: {max_err}"

    # --- bf16-weight default tiling (auto: resident W, single column step) --
    out3 = jax.block_until_ready(mod2(x2))
    max_err3 = jnp.max(jnp.abs(out3.reshape(-1, hidden2) - ref2))
    assert max_err3 < 0.25, f"bf16 resident path mismatch vs reference: {max_err3}"

    print("KERNEL_OK")
</pallas_src>

<mosaic_0001>
module attributes {stable_mosaic.version = 11 : i64} {
  func.func @_pre_ln_linear_kernel(%arg0: i32, %arg1: i32, %arg2: memref<16x32xf32, #tpu.memory_space<vmem>>, %arg3: memref<1x32xf32, #tpu.memory_space<vmem>>, %arg4: memref<1x32xf32, #tpu.memory_space<vmem>>, %arg5: memref<32x32xf32, #tpu.memory_space<vmem>>, %arg6: memref<1x32xf32, #tpu.memory_space<vmem>>, %arg7: memref<16x32xf32, #tpu.memory_space<vmem>>, %arg8: memref<16x32xf32, #tpu.memory_space<vmem>>) attributes {dimension_semantics = [#tpu.dimension_semantics<parallel>, #tpu.dimension_semantics<arbitrary>], iteration_bounds = array<i64: 1, 1>, scalar_prefetch = 0 : i64, scratch_operands = 1 : i64, tpu.core_type = #tpu.core_type<tc>, window_params = [{transform_indices = @transform_0, window_bounds = array<i64: 16, 32>}, {pipeline_mode = #tpu.pipeline_mode<synchronous>, transform_indices = @transform_1, window_bounds = array<i64: 1, 32>}, {pipeline_mode = #tpu.pipeline_mode<synchronous>, transform_indices = @transform_2, window_bounds = array<i64: 1, 32>}, {pipeline_mode = #tpu.pipeline_mode<synchronous>, transform_indices = @transform_3, window_bounds = array<i64: 32, 32>}, {pipeline_mode = #tpu.pipeline_mode<synchronous>, transform_indices = @transform_4, window_bounds = array<i64: 1, 32>}, {transform_indices = @transform_5, window_bounds = array<i64: 16, 32>}]} {
    %c0_i32 = arith.constant 0 : i32
    %0 = arith.cmpi eq, %arg1, %c0_i32 : i32
    %1 = arith.extui %0 : i1 to i32
    %c0_i32_0 = arith.constant 0 : i32
    %2 = arith.cmpi ne, %1, %c0_i32_0 : i32
    scf.if %2 {
      %c0_8 = arith.constant 0 : index
      %c0_9 = arith.constant 0 : index
      %10 = vector.load %arg2[%c0_8, %c0_9] : memref<16x32xf32, #tpu.memory_space<vmem>>, vector<16x32xf32>
      %cst_10 = arith.constant dense<0.000000e+00> : vector<16xf32>
      %11 = vector.multi_reduction <add>, %10, %cst_10 [1] : vector<16x32xf32> to vector<16xf32>
      %12 = vector.shape_cast %11 : vector<16xf32> to vector<16x1xf32>
      %cst_11 = arith.constant 3.125000e-02 : f32
      %13 = vector.broadcast %cst_11 : f32 to vector<16x1xf32>
      %14 = arith.mulf %12, %13 : vector<16x1xf32>
      %15 = vector.broadcast %14 : vector<16x1xf32> to vector<16x32xf32>
      %16 = arith.subf %10, %15 : vector<16x32xf32>
      %17 = arith.mulf %16, %16 : vector<16x32xf32>
      %cst_12 = arith.constant dense<0.000000e+00> : vector<16xf32>
      %18 = vector.multi_reduction <add>, %17, %cst_12 [1] : vector<16x32xf32> to vector<16xf32>
      %19 = vector.shape_cast %18 : vector<16xf32> to vector<16x1xf32>
      %cst_13 = arith.constant 3.125000e-02 : f32
      %20 = vector.broadcast %cst_13 : f32 to vector<16x1xf32>
      %21 = arith.mulf %19, %20 : vector<16x1xf32>
      %cst_14 = arith.constant 9.99999974E-6 : f32
      %22 = vector.broadcast %cst_14 : f32 to vector<16x1xf32>
      %23 = arith.addf %21, %22 : vector<16x1xf32>
      %24 = math.rsqrt %23 : vector<16x1xf32>
      %25 = vector.broadcast %24 : vector<16x1xf32> to vector<16x32xf32>
      %26 = arith.mulf %16, %25 : vector<16x32xf32>
      %c0_15 = arith.constant 0 : index
      %c0_16 = arith.constant 0 : index
      %27 = vector.load %arg3[%c0_15, %c0_16] : memref<1x32xf32, #tpu.memory_space<vmem>>, vector<1x32xf32>
      %28 = vector.broadcast %27 : vector<1x32xf32> to vector<16x32xf32>
      %29 = arith.mulf %26, %28 : vector<16x32xf32>
      %c0_17 = arith.constant 0 : index
      %c0_18 = arith.constant 0 : index
      %30 = vector.load %arg4[%c0_17, %c0_18] : memref<1x32xf32, #tpu.memory_space<vmem>>, vector<1x32xf32>
      %31 = vector.broadcast %30 : vector<1x32xf32> to vector<16x32xf32>
      %32 = arith.addf %29, %31 : vector<16x32xf32>
      %c0_19 = arith.constant 0 : index
      %c0_20 = arith.constant 0 : index
      %33 = vector.load %arg8[%c0_19, %c0_20] : memref<16x32xf32, #tpu.memory_space<vmem>>, vector<16x32xf32>
      tpu.vector_store %arg8[%c0_19, %c0_20], %32 {strides = array<i32>} : memref<16x32xf32, #tpu.memory_space<vmem>>, vector<16x32xf32>,
    } else {
    }
    %c0 = arith.constant 0 : index
    %c0_1 = arith.constant 0 : index
    %3 = vector.load %arg8[%c0, %c0_1] : memref<16x32xf32, #tpu.memory_space<vmem>>, vector<16x32xf32>
    %c0_2 = arith.constant 0 : index
    %c0_3 = arith.constant 0 : index
    %4 = vector.load %arg5[%c0_2, %c0_3] : memref<32x32xf32, #tpu.memory_space<vmem>>, vector<32x32xf32>
    %cst = arith.constant dense<0.000000e+00> : vector<16x32xf32>
    %5 = tpu.matmul %3, %4, %cst {dimension_numbers = #tpu.dot_dimension_numbers<[1], [0], [0], [1], [0, 0, 1, 1], [], []>} : vector<16x32xf32>, vector<32x32xf32>, vector<16x32xf32> -> vector<16x32xf32>
    %c0_4 = arith.constant 0 : index
    %c0_5 = arith.constant 0 : index
    %6 = vector.load %arg6[%c0_4, %c0_5] : memref<1x32xf32, #tpu.memory_space<vmem>>, vector<1x32xf32>
    %7 = vector.broadcast %6 : vector<1x32xf32> to vector<16x32xf32>
    %8 = arith.addf %5, %7 : vector<16x32xf32>
    %c0_6 = arith.constant 0 : index
    %c0_7 = arith.constant 0 : index
    %9 = vector.load %arg7[%c0_6, %c0_7] : memref<16x32xf32, #tpu.memory_space<vmem>>, vector<16x32xf32>
    tpu.vector_store %arg7[%c0_6, %c0_7], %8 {strides = array<i32>} : memref<16x32xf32, #tpu.memory_space<vmem>>, vector<16x32xf32>,
    return
  }
  func.func @transform_0(%arg0: i32, %arg1: i32) -> (i32, i32) {
    %c0_i32 = arith.constant 0 : i32
    %c0_i32_0 = arith.constant 0 : i32
    return %arg0, %c0_i32 : i32, i32
  }
  func.func @transform_1(%arg0: i32, %arg1: i32) -> (i32, i32) {
    %c0_i32 = arith.constant 0 : i32
    %c0_i32_0 = arith.constant 0 : i32
    %c0_i32_1 = arith.constant 0 : i32
    return %c0_i32, %c0_i32_0 : i32, i32
  }
  func.func @transform_2(%arg0: i32, %arg1: i32) -> (i32, i32) {
    %c0_i32 = arith.constant 0 : i32
    %c0_i32_0 = arith.constant 0 : i32
    %c0_i32_1 = arith.constant 0 : i32
    return %c0_i32, %c0_i32_0 : i32, i32
  }
  func.func @transform_3(%arg0: i32, %arg1: i32) -> (i32, i32) {
    %c0_i32 = arith.constant 0 : i32
    %c0_i32_0 = arith.constant 0 : i32
    return %c0_i32, %arg1 : i32, i32
  }
  func.func @transform_4(%arg0: i32, %arg1: i32) -> (i32, i32) {
    %c0_i32 = arith.constant 0 : i32
    %c0_i32_0 = arith.constant 0 : i32
    return %c0_i32, %arg1 : i32, i32
  }
  func.func @transform_5(%arg0: i32, %arg1: i32) -> (i32, i32) {
    %c0_i32 = arith.constant 0 : i32
    return %arg0, %arg1 : i32, i32
  }
}

module attributes {stable_mosaic.version = 11 : i64} {
  func.func @_pre_ln_linear_kernel(%arg0: i32, %arg1: i32, %arg2: memref<16x32xf32, #tpu.memory_space<vmem>>, %arg3: memref<1x32xf32, #tpu.memory_space<vmem>>, %arg4: memref<1x32xf32, #tpu.memory_space<vmem>>, %arg5: memref<32x32xf32, #tpu.memory_space<vmem>>, %arg6: memref<1x32xf32, #tpu.memory_space<vmem>>, %arg7: memref<16x32xf32, #tpu.memory_space<vmem>>, %arg8: memref<16x32xf32, #tpu.memory_space<vmem>>) attributes {dimension_semantics = [#tpu.dimension_semantics<parallel>, #tpu.dimension_semantics<arbitrary>], iteration_bounds = array<i64: 1, 1>, scalar_prefetch = 0 : i64, scratch_operands = 1 : i64, tpu.core_type = #tpu.core_type<tc>, window_params = [{transform_indices = @transform_0, window_bounds = array<i64: 16, 32>}, {pipeline_mode = #tpu.pipeline_mode<synchronous>, transform_indices = @transform_1, window_bounds = array<i64: 1, 32>}, {pipeline_mode = #tpu.pipeline_mode<synchronous>, transform_indices = @transform_2, window_bounds = array<i64: 1, 32>}, {transform_indices = @transform_3, window_bounds = array<i64: 32, 32>}, {transform_indices = @transform_4, window_bounds = array<i64: 1, 32>}, {transform_indices = @transform_5, window_bounds = array<i64: 16, 32>}]} {
    %c0_i32 = arith.constant 0 : i32
    %0 = arith.cmpi eq, %arg1, %c0_i32 : i32
    %1 = arith.extui %0 : i1 to i32
    %c0_i32_0 = arith.constant 0 : i32
    %2 = arith.cmpi ne, %1, %c0_i32_0 : i32
    scf.if %2 {
      %c0_8 = arith.constant 0 : index
      %c0_9 = arith.constant 0 : index
      %10 = vector.load %arg2[%c0_8, %c0_9] : memref<16x32xf32, #tpu.memory_space<vmem>>, vector<16x32xf32>
      %cst_10 = arith.constant dense<0.000000e+00> : vector<16xf32>
      %11 = vector.multi_reduction <add>, %10, %cst_10 [1] : vector<16x32xf32> to vector<16xf32>
      %12 = vector.shape_cast %11 : vector<16xf32> to vector<16x1xf32>
      %cst_11 = arith.constant 3.125000e-02 : f32
      %13 = vector.broadcast %cst_11 : f32 to vector<16x1xf32>
      %14 = arith.mulf %12, %13 : vector<16x1xf32>
      %15 = vector.broadcast %14 : vector<16x1xf32> to vector<16x32xf32>
      %16 = arith.subf %10, %15 : vector<16x32xf32>
      %17 = arith.mulf %16, %16 : vector<16x32xf32>
      %cst_12 = arith.constant dense<0.000000e+00> : vector<16xf32>
      %18 = vector.multi_reduction <add>, %17, %cst_12 [1] : vector<16x32xf32> to vector<16xf32>
      %19 = vector.shape_cast %18 : vector<16xf32> to vector<16x1xf32>
      %cst_13 = arith.constant 3.125000e-02 : f32
      %20 = vector.broadcast %cst_13 : f32 to vector<16x1xf32>
      %21 = arith.mulf %19, %20 : vector<16x1xf32>
      %cst_14 = arith.constant 9.99999974E-6 : f32
      %22 = vector.broadcast %cst_14 : f32 to vector<16x1xf32>
      %23 = arith.addf %21, %22 : vector<16x1xf32>
      %24 = math.rsqrt %23 : vector<16x1xf32>
      %25 = vector.broadcast %24 : vector<16x1xf32> to vector<16x32xf32>
      %26 = arith.mulf %16, %25 : vector<16x32xf32>
      %c0_15 = arith.constant 0 : index
      %c0_16 = arith.constant 0 : index
      %27 = vector.load %arg3[%c0_15, %c0_16] : memref<1x32xf32, #tpu.memory_space<vmem>>, vector<1x32xf32>
      %28 = vector.broadcast %27 : vector<1x32xf32> to vector<16x32xf32>
      %29 = arith.mulf %26, %28 : vector<16x32xf32>
      %c0_17 = arith.constant 0 : index
      %c0_18 = arith.constant 0 : index
      %30 = vector.load %arg4[%c0_17, %c0_18] : memref<1x32xf32, #tpu.memory_space<vmem>>, vector<1x32xf32>
      %31 = vector.broadcast %30 : vector<1x32xf32> to vector<16x32xf32>
      %32 = arith.addf %29, %31 : vector<16x32xf32>
      %c0_19 = arith.constant 0 : index
      %c0_20 = arith.constant 0 : index
      %33 = vector.load %arg8[%c0_19, %c0_20] : memref<16x32xf32, #tpu.memory_space<vmem>>, vector<16x32xf32>
      tpu.vector_store %arg8[%c0_19, %c0_20], %32 {strides = array<i32>} : memref<16x32xf32, #tpu.memory_space<vmem>>, vector<16x32xf32>,
    } else {
    }
    %c0 = arith.constant 0 : index
    %c0_1 = arith.constant 0 : index
    %3 = vector.load %arg8[%c0, %c0_1] : memref<16x32xf32, #tpu.memory_space<vmem>>, vector<16x32xf32>
    %c0_2 = arith.constant 0 : index
    %c0_3 = arith.constant 0 : index
    %4 = vector.load %arg5[%c0_2, %c0_3] : memref<32x32xf32, #tpu.memory_space<vmem>>, vector<32x32xf32>
    %cst = arith.constant dense<0.000000e+00> : vector<16x32xf32>
    %5 = tpu.matmul %3, %4, %cst {dimension_numbers = #tpu.dot_dimension_numbers<[1], [0], [0], [1], [0, 0, 1, 1], [], []>} : vector<16x32xf32>, vector<32x32xf32>, vector<16x32xf32> -> vector<16x32xf32>
    %c0_4 = arith.constant 0 : index
    %c0_5 = arith.constant 0 : index
    %6 = vector.load %arg6[%c0_4, %c0_5] : memref<1x32xf32, #tpu.memory_space<vmem>>, vector<1x32xf32>
    %7 = vector.broadcast %6 : vector<1x32xf32> to vector<16x32xf32>
    %8 = arith.addf %5, %7 : vector<16x32xf32>
    %c0_6 = arith.constant 0 : index
    %c0_7 = arith.constant 0 : index
    %9 = vector.load %arg7[%c0_6, %c0_7] : memref<16x32xf32, #tpu.memory_space<vmem>>, vector<16x32xf32>
    tpu.vector_store %arg7[%c0_6, %c0_7], %8 {strides = array<i32>} : memref<16x32xf32, #tpu.memory_space<vmem>>, vector<16x32xf32>,
    return
  }
  func.func @transform_0(%arg0: i32, %arg1: i32) -> (i32, i32) {
    %c0_i32 = arith.constant 0 : i32
    %c0_i32_0 = arith.constant 0 : i32
    return %arg0, %c0_i32 : i32, i32
  }
  func.func @transform_1(%arg0: i32, %arg1: i32) -> (i32, i32) {
    %c0_i32 = arith.constant 0 : i32
    %c0_i32_0 = arith.constant 0 : i32
    %c0_i32_1 = arith.constant 0 : i32
    return %c0_i32, %c0_i32_0 : i32, i32
  }
  func.func @transform_2(%arg0: i32, %arg1: i32) -> (i32, i32) {
    %c0_i32 = arith.constant 0 : i32
    %c0_i32_0 = arith.constant 0 : i32
    %c0_i32_1 = arith.constant 0 : i32
    return %c0_i32, %c0_i32_0 : i32, i32
  }
  func.func @transform_3(%arg0: i32, %arg1: i32) -> (i32, i32) {
    %c0_i32 = arith.constant 0 : i32
    %c0_i32_0 = arith.constant 0 : i32
    return %c0_i32, %arg1 : i32, i32
  }
  func.func @transform_4(%arg0: i32, %arg1: i32) -> (i32, i32) {
    %c0_i32 = arith.constant 0 : i32
    %c0_i32_0 = arith.constant 0 : i32
    return %c0_i32, %arg1 : i32, i32
  }
  func.func @transform_5(%arg0: i32, %arg1: i32) -> (i32, i32) {
    %c0_i32 = arith.constant 0 : i32
    return %arg0, %arg1 : i32, i32
  }
}

</mosaic_0001>

<llo_original>
// kernel: tpu_custom_call.1
$region0: #{tpu_custom_call.1}
  #allocation0 [shape = 'u32[]', space=smem, size = 0x4, offset = 0x4, fixed_abs, tag = 'smem constant byte address 0x4 - core index']
  #allocation1 [shape = 'u32[72,128]{1,0:T(1,128)}', space=vmem, size = 0x9000, scoped, tag = 'internal scratch']
  #allocation2 [shape = 'f32[16,32]{1,0:T(8,128)}', space=vmem, size = 0x2000, scoped, tag = 'scratch operand']
  %s0 = inlined_call_operand.hbm [shape: f32[16,32], index: 0, kind: input, shape index: {}]
  %s1 = inlined_call_operand.hbm [shape: f32[1,32], index: 1, kind: input, shape index: {}]
  %s2 = inlined_call_operand.vmem [shape: f32[1,32], index: 2, kind: input, shape index: {}]
  %s3 = inlined_call_operand.hbm [shape: f32[32,32], index: 3, kind: input, shape index: {}]
  %s4 = inlined_call_operand.vmem [shape: f32[1,32], index: 4, kind: input, shape index: {}]
  %s5 = inlined_call_operand.hbm [shape: f32[16,32], index: 5, kind: output, shape index: {}]
  %s6 = sld [smem:[#allocation0]]
  $region46: #{tpu_custom_call.1} parent=0
    _
  %s8 = ssub.s32 1, %s6
  %s9 = scalar_select 0, %s8, %s6
  $region1: #{tpu_custom_call.1} parent=0
    #allocation3 [shape = 'u8[8192]{0}', space=vmem, size = 0x2000, scoped, tag = 'input window, operand 0, single buffered']
    #allocation4 [shape = 's32[1]{0}', space=sflag, size = 0x4, scoped, tag = 'scoped memory for tpu_custom_call.1']
    #allocation5 [shape = 's32[1]{0}', space=sflag, size = 0x4, scoped, tag = 'scoped memory for tpu_custom_call.1']
    #allocation6 [shape = 'u8[512]{0}', space=vmem, size = 0x400, scoped, tag = 'input window, operand 1, single buffered']
    #allocation7 [shape = 's32[1]{0}', space=sflag, size = 0x4, scoped, tag = 'scoped memory for tpu_custom_call.1']
    #allocation8 [shape = 'u8[16384]{0}', space=vmem, size = 0x4000, scoped, tag = 'input window, operand 3, single buffered']
    #allocation9 [shape = 'u8[8192]{0}', space=vmem, size = 0x2000, scoped, tag = 'output window, operand 0, single buffered']
    %10 = vsyncpa [#allocation4], 0
    %11 = vsyncpa [#allocation7], 0
    %12 = vsyncpa [#allocation5], 0
    // Predicated region
    $region2: #{tpu_custom_call.1} parent=1 // pred_check
      _
    $region3: #{tpu_custom_call.1} parent=1 // pred_check_branch
      %14 = sbr.rel (0) target = $region5
    $region4: #{tpu_custom_call.1} parent=1 // pred_region
      %16 = vsyncadd [#allocation4], 0
      %s17 = sshll.u32 %s0, 4
      %s18 = int_to_ptr.hbm [resolvable:$true] %s17
      %s19 = sshll.u32 [#allocation3], 4
      %s20 = int_to_ptr.vmem [resolvable:$true] %s19
      %25 = dma.hbm_to_vmem [thread:$0]  %s18, 256, %s20, [#allocation4], 128, 128, 8
    $region5: #{tpu_custom_call.1} parent=1 // pred_fallthru
      _
    // Predicated region
    $region6: #{tpu_custom_call.1} parent=1 // pred_check
      _
    $region7: #{tpu_custom_call.1} parent=1 // pred_check_branch
      %27 = sbr.rel (0) target = $region9
    $region8: #{tpu_custom_call.1} parent=1 // pred_region
      %29 = vsyncadd [#allocation7], 0
      %s31 = sshll.u32 %s1, 4
      %s32 = int_to_ptr.hbm [resolvable:$true] %s31
      %s33 = sshll.u32 [#allocation6], 4
      %s34 = int_to_ptr.vmem [resolvable:$true] %s33
      %36 = dma.hbm_to_vmem [thread:$0]  %s32, 16, %s34, [#allocation7]
    $region9: #{tpu_custom_call.1} parent=1 // pred_fallthru
      _
    // Predicated region
    $region10: #{tpu_custom_call.1} parent=1 // pred_check
      _
    $region11: #{tpu_custom_call.1} parent=1 // pred_check_branch
      %38 = sbr.rel (0) target = $region13
    $region12: #{tpu_custom_call.1} parent=1 // pred_region
      _
    $region13: #{tpu_custom_call.1} parent=1 // pred_fallthru
      _
    // Predicated region
    $region14: #{tpu_custom_call.1} parent=1 // pred_check
      _
    $region15: #{tpu_custom_call.1} parent=1 // pred_check_branch
      %40 = sbr.rel (0) target = $region17
    $region16: #{tpu_custom_call.1} parent=1 // pred_region
      %42 = vsyncadd [#allocation7], 0
      %s43 = sshll.u32 %s3, 4
      %s44 = int_to_ptr.hbm [resolvable:$true] %s43
      %s45 = sshll.u32 [#allocation8], 4
      %s46 = int_to_ptr.vmem [resolvable:$true] %s45
      %51 = dma.hbm_to_vmem [thread:$0]  %s44, 512, %s46, [#allocation7], 128, 128, 8
    $region17: #{tpu_custom_call.1} parent=1 // pred_fallthru
      _
    // Predicated region
    $region18: #{tpu_custom_call.1} parent=1 // pred_check
      _
    $region19: #{tpu_custom_call.1} parent=1 // pred_check_branch
      %53 = sbr.rel (0) target = $region21
    $region20: #{tpu_custom_call.1} parent=1 // pred_region
      _
    $region21: #{tpu_custom_call.1} parent=1 // pred_fallthru
      _
    // Predicated region
    $region22: #{tpu_custom_call.1} parent=1 // pred_check
      _
    $region23: #{tpu_custom_call.1} parent=1 // pred_check_branch
      %55 = sbr.rel (0) target = $region25
    $region24: #{tpu_custom_call.1} parent=1 // pred_region
      %57 = dma.done [#allocation4], 256
    $region25: #{tpu_custom_call.1} parent=1 // pred_fallthru
      _
    // Predicated region
    $region26: #{tpu_custom_call.1} parent=1 // pred_check
      _
    $region27: #{tpu_custom_call.1} parent=1 // pred_check_branch
      %59 = sbr.rel (0) target = $region29
    $region28: #{tpu_custom_call.1} parent=1 // pred_region
      %61 = dma.done [#allocation7], 16
    $region29: #{tpu_custom_call.1} parent=1 // pred_fallthru
      _
    // Predicated region
    $region30: #{tpu_custom_call.1} parent=1 // pred_check
      _
    $region31: #{tpu_custom_call.1} parent=1 // pred_check_branch
      %63 = sbr.rel (0) target = $region33
    $region32: #{tpu_custom_call.1} parent=1 // pred_region
      %65 = dma.done [#allocation7], 512
    $region33: #{tpu_custom_call.1} parent=1 // pred_fallthru
      _
    %p66 = scmp.eq.s32.totalorder 0, 0
    // Predicated region
    $region34: #{tpu_custom_call.1} parent=1 // pred_check
      %p67 = pneg %p66
    $region35: #{tpu_custom_call.1} parent=1 // pred_check_branch
      %69 = sbr.rel (%p67) target = $region37
    $region36: #{tpu_custom_call.1} parent=1 // pred_region
      %v70 = vld [vmem:[#allocation3] sm:$0xff]
      %v71 = vld [vmem:[#allocation3 + $0x8] sm:$0xff]
      %vm72 = vcmask 261120
      %v73 = vsel %vm72, %v70, 0.0
      %74 = vadd.xlane.f32.xlu0 %v73
      %v75 = vpop.xlane.xlu0 %74
      %v76 = vsel %vm72, %v71, 0.0
      %77 = vadd.xlane.f32.xlu0 %v76
      %v78 = vpop.xlane.xlu0 %77
      %v79 = vmul.f32 %v75, 0.03125
      %v80 = vmul.f32 %v78, 0.03125
      %v81 = vsub.f32 %v70, %v79
      %v82 = vsub.f32 %v71, %v80
      %v83 = vmul.f32 %v81, %v81
      %v84 = vmul.f32 %v82, %v82
      %v85 = vsel %vm72, %v83, 0.0
      %86 = vadd.xlane.f32.xlu0 %v85
      %v87 = vpop.xlane.xlu0 %86
      %v88 = vsel %vm72, %v84, 0.0
      %89 = vadd.xlane.f32.xlu0 %v88
      %v90 = vpop.xlane.xlu0 %89
      %v91 = vmul.f32 %v87, 0.03125
      %v92 = vmul.f32 %v90, 0.03125
      %v93 = vadd.f32 %v91, 1e-05
      %v94 = vadd.f32 %v92, 1e-05
      %v95 = vrsqrt.pop %v93
      %v96 = vmul.f32 %v95, %v93
      %v97 = vmul.f32 %v96, %v95
      %v98 = vmul.f32 0.5, %v97
      %v99 = vsub.f32 1.5, %v98
      %v100 = vmul.f32 %v95, %v99
      %vm101 = vweird.f32 %v93
      %vm102 = vweird.f32 %v95
      %vm103 = vmor %vm101, %vm102
      %v104 = vsel %vm103, %v95, %v100
      %v105 = vrsqrt.pop %v94
      %v106 = vmul.f32 %v105, %v94
      %v107 = vmul.f32 %v106, %v105
      %v108 = vmul.f32 0.5, %v107
      %v109 = vsub.f32 1.5, %v108
      %v110 = vmul.f32 %v105, %v109
      %vm111 = vweird.f32 %v94
      %vm112 = vweird.f32 %v105
      %vm113 = vmor %vm111, %vm112
      %v114 = vsel %vm113, %v105, %v110
      %v115 = vmul.f32 %v81, %v104
      %v116 = vmul.f32 %v82, %v114
      %v117 = vld [vmem:[#allocation6] sm:$0x1]
      %v119 = vperm.slane %v117, 0
      %v121 = vmul.f32 %v115, %v119
      %v122 = vmul.f32 %v116, %v119
      %v123 = vld [vmem:[%s2] sm:$0x1]
      %v125 = vperm.slane %v123, 0
      %v127 = vadd.f32 %v121, %v125
      %v128 = vadd.f32 %v122, %v125
      %129 = vst.msk [vmem:[#allocation2] sm:$0xff] %vm72, %v127
      %130 = vst.msk [vmem:[#allocation2 + $0x8] sm:$0xff] %vm72, %v128
    $region37: #{tpu_custom_call.1} parent=1 // pred_fallthru
      _
    %v131 = vld [vmem:[#allocation2] sm:$0xff]
    %v132 = vld [vmem:[#allocation2 + $0x8] sm:$0xff]
    %v133 = vld [vmem:[#allocation8] sm:$0xff]
    %v134 = vld [vmem:[#allocation8 + $0x8] sm:$0xff]
    %v135 = vld [vmem:[#allocation8 + $0x10] sm:$0xff]
    %v136 = vld [vmem:[#allocation8 + $0x18] sm:$0xff]
    %v137 = vld [vmem:[%s4] sm:$0x1]
    %v139 = vperm.slane %v137, 0
    %vm141 = vcmask 261120
    %v143 = vsel %vm141, %v131, 0
    %v146 = vsel %vm141, %v132, 0
    %148 = vmatpush.msra.mxu0 0.0
    %149 = vmatpush.msra.mxu0 0.0
    %150 = vmatpush.msra.mxu0 0.0
    %151 = vmatpush.msra.mxu0 0.0
    %152 = vmatpush.msra.mxu0 0.0
    %153 = vmatpush.msra.mxu0 0.0
    %154 = vmatpush.msra.mxu0 0.0
    %155 = vmatpush.msra.mxu0 0.0
    %156 = vmatpush.msra.mxu0 0.0
    %157 = vmatpush.msra.mxu0 0.0
    %158 = vmatpush.msra.mxu0 0.0
    %159 = vmatpush.msra.mxu0 0.0
    %160 = vmatpush.msra.mxu0 %v136
    %161 = vmatpush.msra.mxu0 %v135
    %162 = vmatpush.msra.mxu0 %v134
    %163 = vmatpush.msra.mxu0 %v133
    %164 = vmatmul.f32.gmra.mxu0 %v143
    %v165 = vpop.f32.mrf.mxu0
    %v166 = vadd.f32 %v139, %v165
    %167 = vmatmul.f32.gmra.mxu0 %v146
    %v168 = vpop.f32.mrf.mxu0
    %v169 = vadd.f32 %v139, %v168
    %170 = vdwg.mxu0
    %171 = vst.msk [vmem:[#allocation9] sm:$0xff] %vm141, %v166
    %172 = vst.msk [vmem:[#allocation9 + $0x8] sm:$0xff] %vm141, %v169
    // Predicated region
    $region38: #{tpu_custom_call.1} parent=1 // pred_check
      _
    $region39: #{tpu_custom_call.1} parent=1 // pred_check_branch
      %174 = sbr.rel (0) target = $region41
    $region40: #{tpu_custom_call.1} parent=1 // pred_region
      %176 = vsyncadd [#allocation5], 0
      %s177 = sshll.u32 [#allocation9], 4
      %s178 = int_to_ptr.vmem [resolvable:$true] %s177
      %s179 = sshll.u32 %s5, 4
      %s180 = int_to_ptr.hbm [resolvable:$true] %s179
      %185 = dma.vmem_to_hbm [thread:$0]  %s178, 256, %s180, [#allocation5], 128, 128, 8
    $region41: #{tpu_custom_call.1} parent=1 // pred_fallthru
      _
    // Predicated region
    $region42: #{tpu_custom_call.1} parent=1 // pred_check
      _
    $region43: #{tpu_custom_call.1} parent=1 // pred_check_branch
      %187 = sbr.rel (0) target = $region45
    $region44: #{tpu_custom_call.1} parent=1 // pred_region
      %189 = dma.done [#allocation5], 256
    $region45: #{tpu_custom_call.1} parent=1 // pred_fallthru
      _
    %190 = vsyncpa [#allocation4], 1
    %191 = vsyncpa [#allocation7], 1
    %192 = vsyncpa [#allocation5], 1

// kernel: tpu_custom_call.1
$region0: #{tpu_custom_call.1}
  #allocation0 [shape = 'u32[]', space=smem, size = 0x4, offset = 0x4, fixed_abs, tag = 'smem constant byte address 0x4 - core index']
  #allocation1 [shape = 'u32[72,128]{1,0:T(1,128)}', space=vmem, size = 0x9000, scoped, tag = 'internal scratch']
  #allocation2 [shape = 'f32[16,32]{1,0:T(8,128)}', space=vmem, size = 0x2000, scoped, tag = 'scratch operand']
  %s0 = inlined_call_operand.hbm [shape: f32[16,32], index: 0, kind: input, shape index: {}]
  %s1 = inlined_call_operand.hbm [shape: f32[1,32], index: 1, kind: input, shape index: {}]
  %s2 = inlined_call_operand.vmem [shape: f32[1,32], index: 2, kind: input, shape index: {}]
  %s3 = inlined_call_operand.hbm [shape: f32[32,32], index: 3, kind: input, shape index: {}]
  %s4 = inlined_call_operand.vmem [shape: f32[1,32], index: 4, kind: input, shape index: {}]
  %s5 = inlined_call_operand.hbm [shape: f32[16,32], index: 5, kind: output, shape index: {}]
  %s6 = sld [smem:[#allocation0]]
  $region46: #{tpu_custom_call.1} parent=0
    _
  %s8 = ssub.s32 1, %s6
  %s9 = scalar_select 0, %s8, %s6
  $region1: #{tpu_custom_call.1} parent=0
    #allocation3 [shape = 'u8[8192]{0}', space=vmem, size = 0x2000, scoped, tag = 'input window, operand 0, single buffered']
    #allocation4 [shape = 's32[1]{0}', space=sflag, size = 0x4, scoped, tag = 'scoped memory for tpu_custom_call.1']
    #allocation5 [shape = 's32[1]{0}', space=sflag, size = 0x4, scoped, tag = 'scoped memory for tpu_custom_call.1']
    #allocation6 [shape = 'u8[512]{0}', space=vmem, size = 0x400, scoped, tag = 'input window, operand 1, single buffered']
    #allocation7 [shape = 's32[1]{0}', space=sflag, size = 0x4, scoped, tag = 'scoped memory for tpu_custom_call.1']
    #allocation8 [shape = 'u8[16384]{0}', space=vmem, size = 0x4000, scoped, tag = 'input window, operand 3, single buffered']
    #allocation9 [shape = 'u8[8192]{0}', space=vmem, size = 0x2000, scoped, tag = 'output window, operand 0, single buffered']
    %10 = vsyncpa [#allocation4], 0
    %11 = vsyncpa [#allocation7], 0
    %12 = vsyncpa [#allocation5], 0
    // Predicated region
    $region2: #{tpu_custom_call.1} parent=1 // pred_check
      _
    $region3: #{tpu_custom_call.1} parent=1 // pred_check_branch
      %14 = sbr.rel (0) target = $region5
    $region4: #{tpu_custom_call.1} parent=1 // pred_region
      %16 = vsyncadd [#allocation4], 0
      %s17 = sshll.u32 %s0, 4
      %s18 = int_to_ptr.hbm [resolvable:$true] %s17
      %s19 = sshll.u32 [#allocation3], 4
      %s20 = int_to_ptr.vmem [resolvable:$true] %s19
      %25 = dma.hbm_to_vmem [thread:$0]  %s18, 256, %s20, [#allocation4], 128, 128, 8
    $region5: #{tpu_custom_call.1} parent=1 // pred_fallthru
      _
    // Predicated region
    $region6: #{tpu_custom_call.1} parent=1 // pred_check
      _
    $region7: #{tpu_custom_call.1} parent=1 // pred_check_branch
      %27 = sbr.rel (0) target = $region9
    $region8: #{tpu_custom_call.1} parent=1 // pred_region
      %29 = vsyncadd [#allocation7], 0
      %s31 = sshll.u32 %s1, 4
      %s32 = int_to_ptr.hbm [resolvable:$true] %s31
      %s33 = sshll.u32 [#allocation6], 4
      %s34 = int_to_ptr.vmem [resolvable:$true] %s33
      %36 = dma.hbm_to_vmem [thread:$0]  %s32, 16, %s34, [#allocation7]
    $region9: #{tpu_custom_call.1} parent=1 // pred_fallthru
      _
    // Predicated region
    $region10: #{tpu_custom_call.1} parent=1 // pred_check
      _
    $region11: #{tpu_custom_call.1} parent=1 // pred_check_branch
      %38 = sbr.rel (0) target = $region13
    $region12: #{tpu_custom_call.1} parent=1 // pred_region
      _
    $region13: #{tpu_custom_call.1} parent=1 // pred_fallthru
      _
    // Predicated region
    $region14: #{tpu_custom_call.1} parent=1 // pred_check
      _
    $region15: #{tpu_custom_call.1} parent=1 // pred_check_branch
      %40 = sbr.rel (0) target = $region17
    $region16: #{tpu_custom_call.1} parent=1 // pred_region
      %42 = vsyncadd [#allocation7], 0
      %s43 = sshll.u32 %s3, 4
      %s44 = int_to_ptr.hbm [resolvable:$true] %s43
      %s45 = sshll.u32 [#allocation8], 4
      %s46 = int_to_ptr.vmem [resolvable:$true] %s45
      %51 = dma.hbm_to_vmem [thread:$0]  %s44, 512, %s46, [#allocation7], 128, 128, 8
    $region17: #{tpu_custom_call.1} parent=1 // pred_fallthru
      _
    // Predicated region
    $region18: #{tpu_custom_call.1} parent=1 // pred_check
      _
    $region19: #{tpu_custom_call.1} parent=1 // pred_check_branch
      %53 = sbr.rel (0) target = $region21
    $region20: #{tpu_custom_call.1} parent=1 // pred_region
      _
    $region21: #{tpu_custom_call.1} parent=1 // pred_fallthru
      _
    // Predicated region
    $region22: #{tpu_custom_call.1} parent=1 // pred_check
      _
    $region23: #{tpu_custom_call.1} parent=1 // pred_check_branch
      %55 = sbr.rel (0) target = $region25
    $region24: #{tpu_custom_call.1} parent=1 // pred_region
      %57 = dma.done [#allocation4], 256
    $region25: #{tpu_custom_call.1} parent=1 // pred_fallthru
      _
    // Predicated region
    $region26: #{tpu_custom_call.1} parent=1 // pred_check
      _
    $region27: #{tpu_custom_call.1} parent=1 // pred_check_branch
      %59 = sbr.rel (0) target = $region29
    $region28: #{tpu_custom_call.1} parent=1 // pred_region
      %61 = dma.done [#allocation7], 16
    $region29: #{tpu_custom_call.1} parent=1 // pred_fallthru
      _
    // Predicated region
    $region30: #{tpu_custom_call.1} parent=1 // pred_check
      _
    $region31: #{tpu_custom_call.1} parent=1 // pred_check_branch
      %63 = sbr.rel (0) target = $region33
    $region32: #{tpu_custom_call.1} parent=1 // pred_region
      %65 = dma.done [#allocation7], 512
    $region33: #{tpu_custom_call.1} parent=1 // pred_fallthru
      _
    %p66 = scmp.eq.s32.totalorder 0, 0
    // Predicated region
    $region34: #{tpu_custom_call.1} parent=1 // pred_check
      %p67 = pneg %p66
    $region35: #{tpu_custom_call.1} parent=1 // pred_check_branch
      %69 = sbr.rel (%p67) target = $region37
    $region36: #{tpu_custom_call.1} parent=1 // pred_region
      %v70 = vld [vmem:[#allocation3] sm:$0xff]
      %v71 = vld [vmem:[#allocation3 + $0x8] sm:$0xff]
      %vm72 = vcmask 261120
      %v73 = vsel %vm72, %v70, 0.0
      %74 = vadd.xlane.f32.xlu0 %v73
      %v75 = vpop.xlane.xlu0 %74
      %v76 = vsel %vm72, %v71, 0.0
      %77 = vadd.xlane.f32.xlu0 %v76
      %v78 = vpop.xlane.xlu0 %77
      %v79 = vmul.f32 %v75, 0.03125
      %v80 = vmul.f32 %v78, 0.03125
      %v81 = vsub.f32 %v70, %v79
      %v82 = vsub.f32 %v71, %v80
      %v83 = vmul.f32 %v81, %v81
      %v84 = vmul.f32 %v82, %v82
      %v85 = vsel %vm72, %v83, 0.0
      %86 = vadd.xlane.f32.xlu0 %v85
      %v87 = vpop.xlane.xlu0 %86
      %v88 = vsel %vm72, %v84, 0.0
      %89 = vadd.xlane.f32.xlu0 %v88
      %v90 = vpop.xlane.xlu0 %89
      %v91 = vmul.f32 %v87, 0.03125
      %v92 = vmul.f32 %v90, 0.03125
      %v93 = vadd.f32 %v91, 1e-05
      %v94 = vadd.f32 %v92, 1e-05
      %v95 = vrsqrt.pop %v93
      %v96 = vmul.f32 %v95, %v93
      %v97 = vmul.f32 %v96, %v95
      %v98 = vmul.f32 0.5, %v97
      %v99 = vsub.f32 1.5, %v98
      %v100 = vmul.f32 %v95, %v99
      %vm101 = vweird.f32 %v93
      %vm102 = vweird.f32 %v95
      %vm103 = vmor %vm101, %vm102
      %v104 = vsel %vm103, %v95, %v100
      %v105 = vrsqrt.pop %v94
      %v106 = vmul.f32 %v105, %v94
      %v107 = vmul.f32 %v106, %v105
      %v108 = vmul.f32 0.5, %v107
      %v109 = vsub.f32 1.5, %v108
      %v110 = vmul.f32 %v105, %v109
      %vm111 = vweird.f32 %v94
      %vm112 = vweird.f32 %v105
      %vm113 = vmor %vm111, %vm112
      %v114 = vsel %vm113, %v105, %v110
      %v115 = vmul.f32 %v81, %v104
      %v116 = vmul.f32 %v82, %v114
      %v117 = vld [vmem:[#allocation6] sm:$0x1]
      %v119 = vperm.slane %v117, 0
      %v121 = vmul.f32 %v115, %v119
      %v122 = vmul.f32 %v116, %v119
      %v123 = vld [vmem:[%s2] sm:$0x1]
      %v125 = vperm.slane %v123, 0
      %v127 = vadd.f32 %v121, %v125
      %v128 = vadd.f32 %v122, %v125
      %129 = vst.msk [vmem:[#allocation2] sm:$0xff] %vm72, %v127
      %130 = vst.msk [vmem:[#allocation2 + $0x8] sm:$0xff] %vm72, %v128
    $region37: #{tpu_custom_call.1} parent=1 // pred_fallthru
      _
    %v131 = vld [vmem:[#allocation2] sm:$0xff]
    %v132 = vld [vmem:[#allocation2 + $0x8] sm:$0xff]
    %v133 = vld [vmem:[#allocation8] sm:$0xff]
    %v134 = vld [vmem:[#allocation8 + $0x8] sm:$0xff]
    %v135 = vld [vmem:[#allocation8 + $0x10] sm:$0xff]
    %v136 = vld [vmem:[#allocation8 + $0x18] sm:$0xff]
    %v137 = vld [vmem:[%s4] sm:$0x1]
    %v139 = vperm.slane %v137, 0
    %vm141 = vcmask 261120
    %v143 = vsel %vm141, %v131, 0
    %v146 = vsel %vm141, %v132, 0
    %148 = vmatpush.msra.mxu0 0.0
    %149 = vmatpush.msra.mxu0 0.0
    %150 = vmatpush.msra.mxu0 0.0
    %151 = vmatpush.msra.mxu0 0.0
    %152 = vmatpush.msra.mxu0 0.0
    %153 = vmatpush.msra.mxu0 0.0
    %154 = vmatpush.msra.mxu0 0.0
    %155 = vmatpush.msra.mxu0 0.0
    %156 = vmatpush.msra.mxu0 0.0
    %157 = vmatpush.msra.mxu0 0.0
    %158 = vmatpush.msra.mxu0 0.0
    %159 = vmatpush.msra.mxu0 0.0
    %160 = vmatpush.msra.mxu0 %v136
    %161 = vmatpush.msra.mxu0 %v135
    %162 = vmatpush.msra.mxu0 %v134
    %163 = vmatpush.msra.mxu0 %v133
    %164 = vmatmul.f32.gmra.mxu0 %v143
    %v165 = vpop.f32.mrf.mxu0
    %v166 = vadd.f32 %v139, %v165
    %167 = vmatmul.f32.gmra.mxu0 %v146
    %v168 = vpop.f32.mrf.mxu0
    %v169 = vadd.f32 %v139, %v168
    %170 = vdwg.mxu0
    %171 = vst.msk [vmem:[#allocation9] sm:$0xff] %vm141, %v166
    %172 = vst.msk [vmem:[#allocation9 + $0x8] sm:$0xff] %vm141, %v169
    // Predicated region
    $region38: #{tpu_custom_call.1} parent=1 // pred_check
      _
    $region39: #{tpu_custom_call.1} parent=1 // pred_check_branch
      %174 = sbr.rel (0) target = $region41
    $region40: #{tpu_custom_call.1} parent=1 // pred_region
      %176 = vsyncadd [#allocation5], 0
      %s177 = sshll.u32 [#allocation9], 4
      %s178 = int_to_ptr.vmem [resolvable:$true] %s177
      %s179 = sshll.u32 %s5, 4
      %s180 = int_to_ptr.hbm [resolvable:$true] %s179
      %185 = dma.vmem_to_hbm [thread:$0]  %s178, 256, %s180, [#allocation5], 128, 128, 8
    $region41: #{tpu_custom_call.1} parent=1 // pred_fallthru
      _
    // Predicated region
    $region42: #{tpu_custom_call.1} parent=1 // pred_check
      _
    $region43: #{tpu_custom_call.1} parent=1 // pred_check_branch
      %187 = sbr.rel (0) target = $region45
    $region44: #{tpu_custom_call.1} parent=1 // pred_region
      %189 = dma.done [#allocation5], 256
    $region45: #{tpu_custom_call.1} parent=1 // pred_fallthru
      _
    %190 = vsyncpa [#allocation4], 1
    %191 = vsyncpa [#allocation7], 1
    %192 = vsyncpa [#allocation5], 1

</llo_original>
